<compile_context>
chip_gen: v7x
topology: tpu7x:2x2x1
jax: 0.10.0
libtpu: 0.0.40
codegen_flags: <defaults>
</compile_context>

<pallas_src>
import jax
import jax.numpy as jnp
from jax.experimental import pallas as pl
from jax.experimental.pallas import tpu as pltpu

EPS = 1e-5  # PyTorch BatchNorm1d default


def _round_up(n, m):
    return ((n + m - 1) // m) * m


def _cdiv(a, b):
    return (a + b - 1) // b


def prepack_linear_mapping(gamma, beta, running_mean, running_var, weight_t, bias,
                           *, matmul_dtype=jnp.bfloat16):
    """One-time parameter packing (hoist this out of the per-call path and cache the result).

    weight_t: (Din, Dout) = transpose of torch's (Dout, Din) Linear weight.
    Returns (params, w_p, Din, Dout):
      params: (3, W) f32 -> rows = [BN scale, BN shift, Linear bias], W = max(pad128(Din), pad128(Dout))
      w_p:    (pad128(Din), pad128(Dout)) in `matmul_dtype`, zero-padded rows/cols.
    """
    Din, Dout = weight_t.shape
    din_p = _round_up(Din, 128)
    dout_p = _round_up(Dout, 128)
    W = max(din_p, dout_p)

    # Fold BatchNorm (eval) into scale/shift: xn = x * scale + shift.
    scale = gamma * jax.lax.rsqrt(running_var + EPS)
    shift = beta - running_mean * scale

    params = jnp.zeros((3, W), jnp.float32)
    params = params.at[0, :Din].set(scale.astype(jnp.float32))
    params = params.at[1, :Din].set(shift.astype(jnp.float32))
    params = params.at[2, :Dout].set(bias.astype(jnp.float32))

    # Zero rows/cols keep padded features/outputs exactly zero.
    w_p = jnp.zeros((din_p, dout_p), matmul_dtype)
    w_p = w_p.at[:Din, :Dout].set(weight_t.astype(matmul_dtype))
    return params, w_p, Din, Dout


def linear_mapping_packed(x, params, w_p, Din, Dout, *, batch_tile=1024, out_dtype=None):
    """Fused BN(eval) -> ReLU -> Linear using prepacked params/weight.

    x: (B, Din). Returns (B, Dout) in `out_dtype` (default x.dtype).
    """
    B, Din_x = x.shape
    assert Din_x == Din, f"x feature dim {Din_x} != packed Din {Din}"
    din_p, dout_p = w_p.shape
    W = params.shape[1]
    out_dtype = out_dtype if out_dtype is not None else x.dtype
    mat_dtype = w_p.dtype

    # ---- balanced batch tiling (pad waste < 8 rows/tile); >=2 grid steps for v7x megacore ----
    bp8 = _round_up(B, 8)
    n_tiles = _cdiv(bp8, batch_tile)
    if bp8 >= 16:
        n_tiles = max(n_tiles, 2)
    tb = _round_up(_cdiv(bp8, n_tiles), 8)
    Bp = n_tiles * tb

    # Only materialize a padded copy of x when padding is actually required.
    if (Bp != B) or (din_p != Din):
        x_in = jnp.zeros((Bp, din_p), x.dtype).at[:B, :Din].set(x)
    else:
        x_in = x

    # ---- kernel ----
    def kernel(x_ref, p_ref, w_ref, o_ref):
        xv = x_ref[...].astype(jnp.float32)            # (tb, din_p)
        sc = p_ref[0:1, :din_p]                        # (1, din_p)
        sh = p_ref[1:2, :din_p]                        # (1, din_p)
        bb = p_ref[2:3, :dout_p]                       # (1, dout_p)

        # Folded BatchNorm + ReLU in f32 on the VPU (v5e has no bf16 VPU).
        h = jnp.maximum(xv * sc + sh, 0.0)

        # Dropout(p=0.25): identity at inference time.

        # Linear on the MXU: bf16 (or f32) operands, f32 accumulation.
        out = jnp.dot(h.astype(mat_dtype), w_ref[...],
                      preferred_element_type=jnp.float32) + bb
        o_ref[...] = out.astype(o_ref.dtype)

    # ---- VMEM budget / buffering ----
    w_bytes = din_p * dout_p * jnp.dtype(mat_dtype).itemsize
    single_buffer_weight = w_bytes > (8 << 20)          # constant index_map => no DMA cost
    w_buffers = 1 if single_buffer_weight else 2
    params_bytes = 3 * W * 4
    x_tile_bytes = tb * din_p * jnp.dtype(x.dtype).itemsize
    out_tile_bytes = tb * dout_p * jnp.dtype(out_dtype).itemsize
    vmem_needed = (w_bytes * w_buffers + params_bytes * 2
                   + (x_tile_bytes + out_tile_bytes) * 2)
    vmem_limit = min(max(int(vmem_needed * 3 // 2) + (2 << 20), 32 << 20), 128 << 20)

    w_spec_kwargs = {}
    if single_buffer_weight:
        w_spec_kwargs["pipeline_mode"] = pl.Buffered(1)

    cost = pl.CostEstimate(
        flops=2 * Bp * din_p * dout_p,
        transcendentals=0,
        bytes_accessed=(Bp * din_p * jnp.dtype(x.dtype).itemsize
                        + params_bytes + w_bytes
                        + Bp * dout_p * jnp.dtype(out_dtype).itemsize),
    )

    out_p = pl.pallas_call(
        kernel,
        out_shape=jax.ShapeDtypeStruct((Bp, dout_p), out_dtype),
        grid=(n_tiles,),
        in_specs=[
            pl.BlockSpec((tb, din_p), lambda i: (i, 0)),                    # x: tiled over batch
            pl.BlockSpec((3, W), lambda i: (0, 0)),                         # packed scale/shift/bias
            pl.BlockSpec((din_p, dout_p), lambda i: (0, 0), **w_spec_kwargs),  # resident weight
        ],
        out_specs=pl.BlockSpec((tb, dout_p), lambda i: (i, 0)),
        compiler_params=pltpu.CompilerParams(
            dimension_semantics=("parallel",),
            vmem_limit_bytes=vmem_limit,
        ),
        cost_estimate=cost,
    )(x_in, params, w_p)

    # Only slice when padding was actually applied.
    if (Bp != B) or (dout_p != Dout):
        return out_p[:B, :Dout]
    return out_p


def linear_mapping(x, gamma, beta, running_mean, running_var, weight_t, bias,
                   *, matmul_dtype=jnp.bfloat16, batch_tile=1024, out_dtype=None):
    """Convenience one-shot wrapper. For repeated calls, prepack once and reuse."""
    params, w_p, Din, Dout = prepack_linear_mapping(
        gamma, beta, running_mean, running_var, weight_t, bias, matmul_dtype=matmul_dtype)
    return linear_mapping_packed(x, params, w_p, Din, Dout,
                                 batch_tile=batch_tile, out_dtype=out_dtype)


def reference(x, gamma, beta, running_mean, running_var, weight_t, bias):
    xn = (x - running_mean) / jnp.sqrt(running_var + EPS) * gamma + beta
    h = jnp.maximum(xn, 0.0)
    return h @ weight_t + bias


if __name__ == "__main__":
    key = jax.random.PRNGKey(0)

    def make_params(k, Din, Dout):
        k_g, k_b, k_m, k_v, k_w, k_bias = jax.random.split(k, 6)
        gamma = 1.0 + 0.1 * jax.random.normal(k_g, (Din,), jnp.float32)
        beta = 0.1 * jax.random.normal(k_b, (Din,), jnp.float32)
        running_mean = 0.05 * jax.random.normal(k_m, (Din,), jnp.float32)
        running_var = jnp.abs(1.0 + 0.1 * jax.random.normal(k_v, (Din,), jnp.float32))
        weight_t = jax.random.normal(k_w, (Din, Dout), jnp.float32) * (1.0 / jnp.sqrt(Din))
        bias = 0.01 * jax.random.normal(k_bias, (Dout,), jnp.float32)
        return gamma, beta, running_mean, running_var, weight_t, bias

    # ---------- Case A: module shapes (image_embed_dim=32 -> Din=64, Dout=32), needs 128-padding ----------
    k_a, k_b_, k_x1, k_x2 = jax.random.split(key, 4)
    Din_a, Dout_a, B_a = 64, 32, 8
    pa = make_params(k_a, Din_a, Dout_a)
    x_a = jax.random.normal(k_x1, (B_a, Din_a), jnp.float32)   # x[0] in the torch module
    ref_a = reference(x_a, *pa)

    # f32 MXU path: tight tolerance.
    out_f32 = jax.block_until_ready(
        linear_mapping(x_a, *pa, matmul_dtype=jnp.float32))
    assert out_f32.shape == (B_a, Dout_a)
    assert jnp.allclose(out_f32, ref_a, atol=1e-4, rtol=1e-4), "f32 path mismatch"

    # bf16 MXU path via hoisted prepack, reused across calls (f32 accumulation, looser tolerance).
    packed = prepack_linear_mapping(*pa, matmul_dtype=jnp.bfloat16)
    out_bf16 = jax.block_until_ready(linear_mapping_packed(x_a, *packed))
    assert out_bf16.shape == (B_a, Dout_a)
    assert jnp.allclose(out_bf16, ref_a, atol=5e-2, rtol=5e-2), "bf16 path mismatch"

    # Ragged batch (B=5): padded rows are computed but sliced off.
    out_odd = jax.block_until_ready(linear_mapping_packed(x_a[:5], *packed))
    assert out_odd.shape == (5, Dout_a)
    assert jnp.allclose(out_odd, ref_a[:5], atol=5e-2, rtol=5e-2), "ragged batch mismatch"

    # ---------- Case B: no-pad fast path (Din=Dout=128, B=16) -> no x copy, no output slice, grid=(2,) ----------
    Din_b, Dout_b, B_b = 128, 128, 16
    pb = make_params(k_b_, Din_b, Dout_b)
    x_b = jax.random.normal(k_x2, (B_b, Din_b), jnp.float32)
    ref_b = reference(x_b, *pb)

    packed_b = prepack_linear_mapping(*pb, matmul_dtype=jnp.bfloat16)
    out_b = jax.block_until_ready(linear_mapping_packed(x_b, *packed_b))
    assert out_b.shape == (B_b, Dout_b)
    assert jnp.allclose(out_b, ref_b, atol=5e-2, rtol=5e-2), "no-pad path mismatch"

    # bf16 output option (halves output store traffic on a mem-bound kernel).
    out_b16 = jax.block_until_ready(
        linear_mapping_packed(x_b, *packed_b, out_dtype=jnp.bfloat16))
    assert out_b16.dtype == jnp.bfloat16
    assert jnp.allclose(out_b16.astype(jnp.float32), ref_b, atol=5e-2, rtol=5e-2), \
        "bf16-output path mismatch"

    print("KERNEL_OK")
</pallas_src>

<mosaic_0001>
module attributes {stable_mosaic.version = 11 : i64} {
  func.func @kernel(%arg0: i32, %arg1: memref<8x128xf32, #tpu.memory_space<vmem>>, %arg2: memref<3x128xf32, #tpu.memory_space<vmem>>, %arg3: memref<128x128xf32, #tpu.memory_space<vmem>>, %arg4: memref<8x128xf32, #tpu.memory_space<vmem>>) attributes {dimension_semantics = [#tpu.dimension_semantics<parallel>], iteration_bounds = array<i64: 1>, scalar_prefetch = 0 : i64, scratch_operands = 0 : i64, tpu.core_type = #tpu.core_type<tc>, window_params = [{transform_indices = @transform_0, window_bounds = array<i64: 8, 128>}, {pipeline_mode = #tpu.pipeline_mode<synchronous>, transform_indices = @transform_1, window_bounds = array<i64: 3, 128>}, {pipeline_mode = #tpu.pipeline_mode<synchronous>, transform_indices = @transform_2, window_bounds = array<i64: 128, 128>}, {transform_indices = @transform_3, window_bounds = array<i64: 8, 128>}]} {
    %c0 = arith.constant 0 : index
    %c0_0 = arith.constant 0 : index
    %0 = vector.load %arg1[%c0, %c0_0] : memref<8x128xf32, #tpu.memory_space<vmem>>, vector<8x128xf32>
    %c0_1 = arith.constant 0 : index
    %c0_2 = arith.constant 0 : index
    %1 = vector.load %arg2[%c0_1, %c0_2] : memref<3x128xf32, #tpu.memory_space<vmem>>, vector<1x128xf32>
    %c1 = arith.constant 1 : index
    %c0_3 = arith.constant 0 : index
    %2 = vector.load %arg2[%c1, %c0_3] : memref<3x128xf32, #tpu.memory_space<vmem>>, vector<1x128xf32>
    %c2 = arith.constant 2 : index
    %c0_4 = arith.constant 0 : index
    %3 = vector.load %arg2[%c2, %c0_4] : memref<3x128xf32, #tpu.memory_space<vmem>>, vector<1x128xf32>
    %4 = vector.broadcast %1 : vector<1x128xf32> to vector<8x128xf32>
    %5 = arith.mulf %0, %4 : vector<8x128xf32>
    %6 = vector.broadcast %2 : vector<1x128xf32> to vector<8x128xf32>
    %7 = arith.addf %5, %6 : vector<8x128xf32>
    %cst = arith.constant 0.000000e+00 : f32
    %8 = vector.broadcast %cst : f32 to vector<8x128xf32>
    %9 = arith.maximumf %7, %8 : vector<8x128xf32>
    %c0_5 = arith.constant 0 : index
    %c0_6 = arith.constant 0 : index
    %10 = vector.load %arg3[%c0_5, %c0_6] : memref<128x128xf32, #tpu.memory_space<vmem>>, vector<128x128xf32>
    %cst_7 = arith.constant dense<0.000000e+00> : vector<8x128xf32>
    %11 = tpu.matmul %9, %10, %cst_7 {dimension_numbers = #tpu.dot_dimension_numbers<[1], [0], [0], [1], [0, 0, 1, 1], [], []>} : vector<8x128xf32>, vector<128x128xf32>, vector<8x128xf32> -> vector<8x128xf32>
    %12 = vector.broadcast %3 : vector<1x128xf32> to vector<8x128xf32>
    %13 = arith.addf %11, %12 : vector<8x128xf32>
    %c0_8 = arith.constant 0 : index
    %c0_9 = arith.constant 0 : index
    %14 = vector.load %arg4[%c0_8, %c0_9] : memref<8x128xf32, #tpu.memory_space<vmem>>, vector<8x128xf32>
    tpu.vector_store %arg4[%c0_8, %c0_9], %13 {strides = array<i32>} : memref<8x128xf32, #tpu.memory_space<vmem>>, vector<8x128xf32>,
    return
  }
  func.func @transform_0(%arg0: i32) -> (i32, i32) {
    %c0_i32 = arith.constant 0 : i32
    %c0_i32_0 = arith.constant 0 : i32
    return %arg0, %c0_i32 : i32, i32
  }
  func.func @transform_1(%arg0: i32) -> (i32, i32) {
    %c0_i32 = arith.constant 0 : i32
    %c0_i32_0 = arith.constant 0 : i32
    %c0_i32_1 = arith.constant 0 : i32
    return %c0_i32, %c0_i32_0 : i32, i32
  }
  func.func @transform_2(%arg0: i32) -> (i32, i32) {
    %c0_i32 = arith.constant 0 : i32
    %c0_i32_0 = arith.constant 0 : i32
    %c0_i32_1 = arith.constant 0 : i32
    return %c0_i32, %c0_i32_0 : i32, i32
  }
  func.func @transform_3(%arg0: i32) -> (i32, i32) {
    %c0_i32 = arith.constant 0 : i32
    %c0_i32_0 = arith.constant 0 : i32
    return %arg0, %c0_i32 : i32, i32
  }
}

</mosaic_0001>

<llo_original>
// kernel: tpu_custom_call.1
$region0: #{tpu_custom_call.1}
  #allocation0 [shape = 'u32[]', space=smem, size = 0x4, offset = 0x4, fixed_abs, tag = 'smem constant byte address 0x4 - core index']
  #allocation1 [shape = 'u32[144,128]{1,0:T(1,128)}', space=vmem, size = 0x12000, scoped, tag = 'internal scratch']
  %s0 = inlined_call_operand.hbm [shape: f32[8,128], index: 0, kind: input, shape index: {}]
  %s1 = inlined_call_operand.hbm [shape: f32[3,128], index: 1, kind: input, shape index: {}]
  %s2 = inlined_call_operand.hbm [shape: f32[128,128], index: 2, kind: input, shape index: {}]
  %s3 = inlined_call_operand.hbm [shape: f32[8,128], index: 3, kind: output, shape index: {}]
  %s4 = sld [smem:[#allocation0]]
  $region34: #{tpu_custom_call.1} parent=0
    _
  %s6 = ssub.s32 1, %s4
  %s7 = scalar_select 0, %s6, %s4
  $region1: #{tpu_custom_call.1} parent=0
    #allocation2 [shape = 'u8[4096]{0}', space=vmem, size = 0x1000, scoped, tag = 'input window, operand 0, single buffered']
    #allocation3 [shape = 's32[1]{0}', space=sflag, size = 0x4, scoped, tag = 'scoped memory for tpu_custom_call.1']
    #allocation4 [shape = 's32[1]{0}', space=sflag, size = 0x4, scoped, tag = 'scoped memory for tpu_custom_call.1']
    #allocation5 [shape = 'u8[2048]{0}', space=vmem, size = 0x800, scoped, tag = 'input window, operand 1, single buffered']
    #allocation6 [shape = 's32[1]{0}', space=sflag, size = 0x4, scoped, tag = 'scoped memory for tpu_custom_call.1']
    #allocation7 [shape = 'u8[65536]{0}', space=vmem, size = 0x10000, scoped, tag = 'input window, operand 2, single buffered']
    #allocation8 [shape = 'u8[4096]{0}', space=vmem, size = 0x1000, scoped, tag = 'output window, operand 0, single buffered']
    %8 = vsyncpa [#allocation3], 0
    %9 = vsyncpa [#allocation6], 0
    %10 = vsyncpa [#allocation4], 0
    // Predicated region
    $region2: #{tpu_custom_call.1} parent=1 // pred_check
      _
    $region3: #{tpu_custom_call.1} parent=1 // pred_check_branch
      %12 = sbr.rel (0) target = $region5
    $region4: #{tpu_custom_call.1} parent=1 // pred_region
      %s14 = ssub.s32 128, 128
      %15 = vsyncadd [#allocation3], %s14
      %s17 = sshll.u32 [#allocation2], 4
      %s18 = int_to_ptr.vmem [resolvable:$true] %s17
      %20 = dma.hbm_to_vmem [thread:$0]  %s0, 128, %s18, [#allocation3]
    $region5: #{tpu_custom_call.1} parent=1 // pred_fallthru
      _
    // Predicated region
    $region6: #{tpu_custom_call.1} parent=1 // pred_check
      _
    $region7: #{tpu_custom_call.1} parent=1 // pred_check_branch
      %22 = sbr.rel (0) target = $region9
    $region8: #{tpu_custom_call.1} parent=1 // pred_region
      %s24 = ssub.s32 64, 64
      %25 = vsyncadd [#allocation6], %s24
      %s27 = sshll.u32 [#allocation5], 4
      %s28 = int_to_ptr.vmem [resolvable:$true] %s27
      %30 = dma.hbm_to_vmem [thread:$0]  %s1, 64, %s28, [#allocation6]
    $region9: #{tpu_custom_call.1} parent=1 // pred_fallthru
      _
    // Predicated region
    $region10: #{tpu_custom_call.1} parent=1 // pred_check
      _
    $region11: #{tpu_custom_call.1} parent=1 // pred_check_branch
      %32 = sbr.rel (0) target = $region13
    $region12: #{tpu_custom_call.1} parent=1 // pred_region
      %s34 = ssub.s32 2048, 2048
      %35 = vsyncadd [#allocation6], %s34
      %s36 = sshll.u32 [#allocation7], 4
      %s37 = int_to_ptr.vmem [resolvable:$true] %s36
      %42 = dma.hbm_to_vmem [thread:$0]  %s2, 2048, %s37, [#allocation6], 128, 128, 8
    $region13: #{tpu_custom_call.1} parent=1 // pred_fallthru
      _
    // Predicated region
    $region14: #{tpu_custom_call.1} parent=1 // pred_check
      _
    $region15: #{tpu_custom_call.1} parent=1 // pred_check_branch
      %44 = sbr.rel (0) target = $region17
    $region16: #{tpu_custom_call.1} parent=1 // pred_region
      %45 = dma.done [#allocation3], 128
    $region17: #{tpu_custom_call.1} parent=1 // pred_fallthru
      _
    // Predicated region
    $region18: #{tpu_custom_call.1} parent=1 // pred_check
      _
    $region19: #{tpu_custom_call.1} parent=1 // pred_check_branch
      %47 = sbr.rel (0) target = $region21
    $region20: #{tpu_custom_call.1} parent=1 // pred_region
      %48 = dma.done [#allocation6], 64
    $region21: #{tpu_custom_call.1} parent=1 // pred_fallthru
      _
    // Predicated region
    $region22: #{tpu_custom_call.1} parent=1 // pred_check
      _
    $region23: #{tpu_custom_call.1} parent=1 // pred_check_branch
      %50 = sbr.rel (0) target = $region25
    $region24: #{tpu_custom_call.1} parent=1 // pred_region
      %51 = dma.done [#allocation6], 2048
    $region25: #{tpu_custom_call.1} parent=1 // pred_fallthru
      _
    %v52 = vld [vmem:[#allocation2] sm:$0xff]
    %v53 = vld [vmem:[#allocation5] sm:$0x1]
    %v54 = vld [vmem:[#allocation5 + $0x1] sm:$0x1]
    %v55 = vld [vmem:[#allocation5 + $0x2] sm:$0x1]
    %v56 = vlaneseq
    %v57 = vshrl.u32 %v56, 7
    %v58 = vsub.s32 0, %v57
    %v59 = vrot.slane %v53, %v58
    %v60 = vmul.f32 %v52, %v59
    %v61 = vlaneseq
    %v62 = vshrl.u32 %v61, 7
    %v63 = vsub.s32 0, %v62
    %v64 = vrot.slane %v54, %v63
    %v65 = vadd.f32 %v60, %v64
    %v66 = vmax.f32 %v65, 0.0
    %v67 = vld [vmem:[#allocation7] sm:$0xff]
    %v68 = vld [vmem:[#allocation7 + $0x8] sm:$0xff]
    %v69 = vld [vmem:[#allocation7 + $0x10] sm:$0xff]
    %v70 = vld [vmem:[#allocation7 + $0x18] sm:$0xff]
    %v71 = vld [vmem:[#allocation7 + $0x20] sm:$0xff]
    %v72 = vld [vmem:[#allocation7 + $0x28] sm:$0xff]
    %v73 = vld [vmem:[#allocation7 + $0x30] sm:$0xff]
    %v74 = vld [vmem:[#allocation7 + $0x38] sm:$0xff]
    %v75 = vld [vmem:[#allocation7 + $0x40] sm:$0xff]
    %v76 = vld [vmem:[#allocation7 + $0x48] sm:$0xff]
    %v77 = vld [vmem:[#allocation7 + $0x50] sm:$0xff]
    %v78 = vld [vmem:[#allocation7 + $0x58] sm:$0xff]
    %v79 = vld [vmem:[#allocation7 + $0x60] sm:$0xff]
    %v80 = vld [vmem:[#allocation7 + $0x68] sm:$0xff]
    %v81 = vld [vmem:[#allocation7 + $0x70] sm:$0xff]
    %v82 = vld [vmem:[#allocation7 + $0x78] sm:$0xff]
    %v83 = vlaneseq
    %v84 = vshrl.u32 %v83, 7
    %v85 = vsub.s32 0, %v84
    %v86 = vrot.slane %v55, %v85
    %87 = vmatprep.subr.mxu0 0.0
    %88 = vmatpush1.msra.mxu0 %v67
    %89 = vmatprep.subr.mxu0 0.0
    %90 = vmatpush1.msra.mxu0 %v68
    %91 = vmatprep.subr.mxu0 0.0
    %92 = vmatpush1.msra.mxu0 %v69
    %93 = vmatprep.subr.mxu0 0.0
    %94 = vmatpush1.msra.mxu0 %v70
    %95 = vmatprep.subr.mxu0 0.0
    %96 = vmatpush1.msra.mxu0 %v71
    %97 = vmatprep.subr.mxu0 0.0
    %98 = vmatpush1.msra.mxu0 %v72
    %99 = vmatprep.subr.mxu0 0.0
    %100 = vmatpush1.msra.mxu0 %v73
    %101 = vmatprep.subr.mxu0 0.0
    %102 = vmatpush1.msra.mxu0 %v74
    %103 = vmatprep.subr.mxu0 0.0
    %104 = vmatpush1.msra.mxu0 %v75
    %105 = vmatprep.subr.mxu0 0.0
    %106 = vmatpush1.msra.mxu0 %v76
    %107 = vmatprep.subr.mxu0 0.0
    %108 = vmatpush1.msra.mxu0 %v77
    %109 = vmatprep.subr.mxu0 0.0
    %110 = vmatpush1.msra.mxu0 %v78
    %111 = vmatprep.subr.mxu0 0.0
    %112 = vmatpush1.msra.mxu0 %v79
    %113 = vmatprep.subr.mxu0 0.0
    %114 = vmatpush1.msra.mxu0 %v80
    %115 = vmatprep.subr.mxu0 0.0
    %116 = vmatpush1.msra.mxu0 %v81
    %117 = vmatprep.subr.mxu0 0.0
    %118 = vmatpush1.msra.mxu0 %v82
    %119 = vmatprep.subr.mxu0 0.0
    %120 = vmatpush1.msra.mxu0 0.0
    %121 = vmatprep.subr.mxu0 0.0
    %122 = vmatpush1.msra.mxu0 0.0
    %123 = vmatprep.subr.mxu0 0.0
    %124 = vmatpush1.msra.mxu0 0.0
    %125 = vmatprep.subr.mxu0 0.0
    %126 = vmatpush1.msra.mxu0 0.0
    %127 = vmatprep.subr.mxu0 0.0
    %128 = vmatpush1.msra.mxu0 0.0
    %129 = vmatprep.subr.mxu0 0.0
    %130 = vmatpush1.msra.mxu0 0.0
    %131 = vmatprep.subr.mxu0 0.0
    %132 = vmatpush1.msra.mxu0 0.0
    %133 = vmatprep.subr.mxu0 0.0
    %134 = vmatpush1.msra.mxu0 0.0
    %135 = vmatprep.subr.mxu0 0.0
    %136 = vmatpush1.msra.mxu0 0.0
    %137 = vmatprep.subr.mxu0 0.0
    %138 = vmatpush1.msra.mxu0 0.0
    %139 = vmatprep.subr.mxu0 0.0
    %140 = vmatpush1.msra.mxu0 0.0
    %141 = vmatprep.subr.mxu0 0.0
    %142 = vmatpush1.msra.mxu0 0.0
    %143 = vmatprep.subr.mxu0 0.0
    %144 = vmatpush1.msra.mxu0 0.0
    %145 = vmatprep.subr.mxu0 0.0
    %146 = vmatpush1.msra.mxu0 0.0
    %147 = vmatprep.subr.mxu0 0.0
    %148 = vmatpush1.msra.mxu0 0.0
    %149 = vmatprep.subr.mxu0 0.0
    %150 = vmatpush1.msra.mxu0 0.0
    %151 = vmatprep.mubr.f32.mxu0 0.0
    %152 = vmatmul.mubr.f32.gmra.mrb[0].mxu0 %v66
    %v153 = vpop.f32.mrb[0].mxu0
    %v154 = vadd.f32 %v86, %v153
    %v155 = vpop.f32.mrb[0].mxu0
    %156 = vdwg.mxu0
    %157 = vst [vmem:[#allocation8] sm:$0xff] %v154
    // Predicated region
    $region26: #{tpu_custom_call.1} parent=1 // pred_check
      _
    $region27: #{tpu_custom_call.1} parent=1 // pred_check_branch
      %159 = sbr.rel (0) target = $region29
    $region28: #{tpu_custom_call.1} parent=1 // pred_region
      %s161 = ssub.s32 128, 128
      %162 = vsyncadd [#allocation4], %s161
      %s164 = sshll.u32 [#allocation8], 4
      %s165 = int_to_ptr.vmem [resolvable:$true] %s164
      %167 = dma.vmem_to_hbm [thread:$0]  %s165, 128, %s3, [#allocation4]
    $region29: #{tpu_custom_call.1} parent=1 // pred_fallthru
      _
    // Predicated region
    $region30: #{tpu_custom_call.1} parent=1 // pred_check
      _
    $region31: #{tpu_custom_call.1} parent=1 // pred_check_branch
      %169 = sbr.rel (0) target = $region33
    $region32: #{tpu_custom_call.1} parent=1 // pred_region
      %170 = dma.done [#allocation4], 128
    $region33: #{tpu_custom_call.1} parent=1 // pred_fallthru
      _
    %171 = vsyncpa [#allocation3], 1
    %172 = vsyncpa [#allocation6], 1
    %173 = vsyncpa [#allocation4], 1

</llo_original>
